<compile_context>
chip_gen: v5e
topology: v5e:2x2
jax: 0.10.0
libtpu: 0.0.40
codegen_flags: <defaults>
</compile_context>

<pallas_src>
import jax
import jax.numpy as jnp
from jax.experimental import pallas as pl
from jax.experimental.pallas import tpu as pltpu


def _split_kernel(x_ref, s0_ref, s1_ref, s2_ref):
    # x_ref: (tb, 3*HW) lane-flattened input block.
    # Each split is a lane-range slice -> lane-dense (tb, HW) output slab.
    hw = s0_ref.shape[-1]
    s0_ref[...] = x_ref[:, 0 * hw:1 * hw]
    s1_ref[...] = x_ref[:, 1 * hw:2 * hw]
    s2_ref[...] = x_ref[:, 2 * hw:3 * hw]


def _vmem_capacity_bytes():
    """Physical VMEM of the current chip; conservative default if unknown."""
    try:
        return int(pltpu.get_tpu_info().vmem_capacity_bytes)
    except Exception:
        return 64 << 20  # assume the smallest current part (v7x-sized)


def _pick_batch_tile(B, HW, itemsize, vmem_budget_bytes):
    """Largest batch tile whose double-buffered blocks fit the VMEM budget.

    Exact footprint for the flattened layout per grid step (double-buffered):
        input (tb, 3*HW) + three outputs (tb, HW)  =>  2 * 6 * tb * HW * itemsize.
    tb is either the full batch (full-extent exemption) or a multiple of the
    dtype's sublane packing, never larger than B, and capped so the batch grid
    has at least 2 steps when B is big (v7x megacore sharding).
    """
    pack = max(8, 32 // itemsize)            # 8 f32 / 16 bf16 / 32 int8
    max_tb = max(1, vmem_budget_bytes // (12 * HW * itemsize))
    if B <= pack:
        return B                              # single full-extent block
    tb = min(B, max_tb, pl.cdiv(B, 2))        # >= 2 grid steps when possible
    tb = max(pack, (tb // pack) * pack)       # sublane-packing aligned
    return min(tb, B)


def model_forward(x):
    """x: (B, 3, H, W). Returns (concatenated, (split0, split1, split2))."""
    B, C, H, W = x.shape
    assert C == 3, "torch.split(v1, [1,1,1], dim=1) requires 3 channels"
    HW = H * W
    itemsize = jnp.dtype(x.dtype).itemsize

    # Lane-flattened view: (B, C*HW). Contiguous reshape -> free, no data movement.
    x2 = x.reshape(B, C * HW)

    capacity = _vmem_capacity_bytes()
    budget = capacity // 4                    # 32 MiB on 128-MiB parts, 16 MiB on v7x
    tb = _pick_batch_tile(B, HW, itemsize, budget)

    # Scoped-VMEM limit that actually covers the double-buffered footprint.
    footprint = 12 * tb * HW * itemsize
    vmem_limit = int(min(capacity // 2, max(footprint + (4 << 20), 16 << 20)))

    grid = (pl.cdiv(B, tb),)
    split_shape = jax.ShapeDtypeStruct((B, HW), x.dtype)

    s0, s1, s2 = pl.pallas_call(
        _split_kernel,
        out_shape=(split_shape, split_shape, split_shape),
        grid=grid,
        in_specs=[pl.BlockSpec((tb, C * HW), lambda i: (i, 0))],
        out_specs=(
            pl.BlockSpec((tb, HW), lambda i: (i, 0)),
            pl.BlockSpec((tb, HW), lambda i: (i, 0)),
            pl.BlockSpec((tb, HW), lambda i: (i, 0)),
        ),
        compiler_params=pltpu.CompilerParams(
            dimension_semantics=("parallel",),
            vmem_limit_bytes=vmem_limit,
        ),
    )(x2)

    splits = tuple(s.reshape(B, 1, H, W) for s in (s0, s1, s2))
    # torch.cat(torch.split(x, [1,1,1], dim=1), dim=1) == x bit-for-bit, so the
    # concatenated output is the input itself — no kernel work, no extra HBM copy.
    concatenated = x
    return concatenated, splits


if __name__ == "__main__":
    key = jax.random.PRNGKey(0)
    B, C, H, W = 2, 3, 16, 16
    x = jax.random.normal(key, (B, C, H, W), dtype=jnp.float32)

    cat, splits = model_forward(x)
    jax.block_until_ready((cat, splits))

    # Sanity checks against the torch semantics (pure-JAX reference).
    assert cat.shape == (B, 3, H, W)
    assert all(s.shape == (B, 1, H, W) for s in splits)
    assert jnp.array_equal(cat, x)                      # cat(split(x)) == x
    assert jnp.array_equal(splits[0], x[:, 0:1])
    assert jnp.array_equal(splits[1], x[:, 1:2])
    assert jnp.array_equal(splits[2], x[:, 2:3])

    print("KERNEL_OK")
</pallas_src>

<mosaic_0001>
module attributes {stable_mosaic.version = 11 : i64} {
  func.func @_split_kernel(%arg0: i32, %arg1: memref<2x768xf32, #tpu.memory_space<vmem>>, %arg2: memref<2x256xf32, #tpu.memory_space<vmem>>, %arg3: memref<2x256xf32, #tpu.memory_space<vmem>>, %arg4: memref<2x256xf32, #tpu.memory_space<vmem>>) attributes {dimension_semantics = [#tpu.dimension_semantics<parallel>], iteration_bounds = array<i64: 1>, scalar_prefetch = 0 : i64, scratch_operands = 0 : i64, tpu.core_type = #tpu.core_type<tc>, window_params = [{transform_indices = @transform_0, window_bounds = array<i64: 2, 768>}, {transform_indices = @transform_1, window_bounds = array<i64: 2, 256>}, {transform_indices = @transform_2, window_bounds = array<i64: 2, 256>}, {transform_indices = @transform_3, window_bounds = array<i64: 2, 256>}]} {
    %c0 = arith.constant 0 : index
    %c0_0 = arith.constant 0 : index
    %0 = vector.load %arg1[%c0, %c0_0] : memref<2x768xf32, #tpu.memory_space<vmem>>, vector<2x256xf32>
    %c0_1 = arith.constant 0 : index
    %c0_2 = arith.constant 0 : index
    %1 = vector.load %arg2[%c0_1, %c0_2] : memref<2x256xf32, #tpu.memory_space<vmem>>, vector<2x256xf32>
    tpu.vector_store %arg2[%c0_1, %c0_2], %0 {strides = array<i32>} : memref<2x256xf32, #tpu.memory_space<vmem>>, vector<2x256xf32>,
    %c0_3 = arith.constant 0 : index
    %c256 = arith.constant 256 : index
    %2 = vector.load %arg1[%c0_3, %c256] : memref<2x768xf32, #tpu.memory_space<vmem>>, vector<2x256xf32>
    %c0_4 = arith.constant 0 : index
    %c0_5 = arith.constant 0 : index
    %3 = vector.load %arg3[%c0_4, %c0_5] : memref<2x256xf32, #tpu.memory_space<vmem>>, vector<2x256xf32>
    tpu.vector_store %arg3[%c0_4, %c0_5], %2 {strides = array<i32>} : memref<2x256xf32, #tpu.memory_space<vmem>>, vector<2x256xf32>,
    %c0_6 = arith.constant 0 : index
    %c512 = arith.constant 512 : index
    %4 = vector.load %arg1[%c0_6, %c512] : memref<2x768xf32, #tpu.memory_space<vmem>>, vector<2x256xf32>
    %c0_7 = arith.constant 0 : index
    %c0_8 = arith.constant 0 : index
    %5 = vector.load %arg4[%c0_7, %c0_8] : memref<2x256xf32, #tpu.memory_space<vmem>>, vector<2x256xf32>
    tpu.vector_store %arg4[%c0_7, %c0_8], %4 {strides = array<i32>} : memref<2x256xf32, #tpu.memory_space<vmem>>, vector<2x256xf32>,
    return
  }
  func.func @transform_0(%arg0: i32) -> (i32, i32) {
    %c0_i32 = arith.constant 0 : i32
    %c0_i32_0 = arith.constant 0 : i32
    return %arg0, %c0_i32 : i32, i32
  }
  func.func @transform_1(%arg0: i32) -> (i32, i32) {
    %c0_i32 = arith.constant 0 : i32
    %c0_i32_0 = arith.constant 0 : i32
    return %arg0, %c0_i32 : i32, i32
  }
  func.func @transform_2(%arg0: i32) -> (i32, i32) {
    %c0_i32 = arith.constant 0 : i32
    %c0_i32_0 = arith.constant 0 : i32
    return %arg0, %c0_i32 : i32, i32
  }
  func.func @transform_3(%arg0: i32) -> (i32, i32) {
    %c0_i32 = arith.constant 0 : i32
    %c0_i32_0 = arith.constant 0 : i32
    return %arg0, %c0_i32 : i32, i32
  }
}

</mosaic_0001>

<llo_original>
// kernel: tpu_custom_call.1
$region0: #{tpu_custom_call.1}
  #allocation0 [shape = 'u32[]', space=smem, size = 0x4, offset = 0x4, fixed_abs, tag = 'smem constant byte address 0x4 - core index']
  #allocation1 [shape = 'u32[72,128]{1,0:T(1,128)}', space=vmem, size = 0x9000, scoped, tag = 'internal scratch']
  %s0 = inlined_call_operand.hbm [shape: f32[2,768], index: 0, kind: input, shape index: {}]
  %s1 = inlined_call_operand.hbm [shape: f32[2,256], index: 1, kind: output, shape index: {0}]
  %s2 = inlined_call_operand.hbm [shape: f32[2,256], index: 2, kind: output, shape index: {1}]
  %s3 = inlined_call_operand.hbm [shape: f32[2,256], index: 3, kind: output, shape index: {2}]
  %4 = xla_tuple %s1, %s2, %s3
  %s5 = sld [smem:[#allocation0]]
  $region34: #{tpu_custom_call.1} parent=0
    _
  %s7 = ssub.s32 1, %s5
  %s8 = scalar_select 0, %s7, %s5
  $region1: #{tpu_custom_call.1} parent=0
    #allocation2 [shape = 'u8[6144]{0}', space=vmem, size = 0x1800, scoped, tag = 'input window, operand 0, single buffered']
    #allocation3 [shape = 's32[1]{0}', space=sflag, size = 0x4, scoped, tag = 'scoped memory for tpu_custom_call.1']
    #allocation4 [shape = 's32[1]{0}', space=sflag, size = 0x4, scoped, tag = 'scoped memory for tpu_custom_call.1']
    #allocation5 [shape = 'u8[2048]{0}', space=vmem, size = 0x800, scoped, tag = 'output window, operand 0, single buffered']
    #allocation6 [shape = 'u8[2048]{0}', space=vmem, size = 0x800, scoped, tag = 'output window, operand 1, single buffered']
    #allocation7 [shape = 's32[1]{0}', space=sflag, size = 0x4, scoped, tag = 'scoped memory for tpu_custom_call.1']
    #allocation8 [shape = 'u8[2048]{0}', space=vmem, size = 0x800, scoped, tag = 'output window, operand 2, single buffered']
    %9 = vsyncpa [#allocation3], 0
    %10 = vsyncpa [#allocation4], 0
    %11 = vsyncpa [#allocation7], 0
    // Predicated region
    $region2: #{tpu_custom_call.1} parent=1 // pred_check
      _
    $region3: #{tpu_custom_call.1} parent=1 // pred_check_branch
      %13 = sbr.rel (0) target = $region5
    $region4: #{tpu_custom_call.1} parent=1 // pred_region
      %15 = vsyncadd [#allocation3], 0
      %s17 = sshll.u32 %s0, 4
      %s18 = int_to_ptr.hbm [resolvable:$true] %s17
      %s19 = sshll.u32 [#allocation2], 4
      %s20 = int_to_ptr.vmem [resolvable:$true] %s19
      %22 = dma.hbm_to_vmem [thread:$0]  %s18, 192, %s20, [#allocation3]
    $region5: #{tpu_custom_call.1} parent=1 // pred_fallthru
      _
    // Predicated region
    $region6: #{tpu_custom_call.1} parent=1 // pred_check
      _
    $region7: #{tpu_custom_call.1} parent=1 // pred_check_branch
      %24 = sbr.rel (0) target = $region9
    $region8: #{tpu_custom_call.1} parent=1 // pred_region
      %26 = dma.done [#allocation3], 192
    $region9: #{tpu_custom_call.1} parent=1 // pred_fallthru
      _
    %v27 = vld [vmem:[#allocation2] sm:$0xf]
    %28 = vst [vmem:[#allocation5] sm:$0xf] %v27
    %v29 = vld [vmem:[#allocation2 + $0x4] sm:$0xf]
    %30 = vst [vmem:[#allocation6] sm:$0xf] %v29
    %v31 = vld [vmem:[#allocation2 + $0x8] sm:$0xf]
    %32 = vst [vmem:[#allocation8] sm:$0xf] %v31
    // Predicated region
    $region10: #{tpu_custom_call.1} parent=1 // pred_check
      _
    $region11: #{tpu_custom_call.1} parent=1 // pred_check_branch
      %34 = sbr.rel (0) target = $region13
    $region12: #{tpu_custom_call.1} parent=1 // pred_region
      %36 = vsyncadd [#allocation4], 0
      %s38 = sshll.u32 [#allocation5], 4
      %s39 = int_to_ptr.vmem [resolvable:$true] %s38
      %s40 = sshll.u32 %s1, 4
      %s41 = int_to_ptr.hbm [resolvable:$true] %s40
      %43 = dma.vmem_to_hbm [thread:$0]  %s39, 64, %s41, [#allocation4]
    $region13: #{tpu_custom_call.1} parent=1 // pred_fallthru
      _
    // Predicated region
    $region14: #{tpu_custom_call.1} parent=1 // pred_check
      _
    $region15: #{tpu_custom_call.1} parent=1 // pred_check_branch
      %45 = sbr.rel (0) target = $region17
    $region16: #{tpu_custom_call.1} parent=1 // pred_region
      %47 = vsyncadd [#allocation7], 0
      %s49 = sshll.u32 [#allocation6], 4
      %s50 = int_to_ptr.vmem [resolvable:$true] %s49
      %s51 = sshll.u32 %s2, 4
      %s52 = int_to_ptr.hbm [resolvable:$true] %s51
      %54 = dma.vmem_to_hbm [thread:$0]  %s50, 64, %s52, [#allocation7]
    $region17: #{tpu_custom_call.1} parent=1 // pred_fallthru
      _
    // Predicated region
    $region18: #{tpu_custom_call.1} parent=1 // pred_check
      _
    $region19: #{tpu_custom_call.1} parent=1 // pred_check_branch
      %56 = sbr.rel (0) target = $region21
    $region20: #{tpu_custom_call.1} parent=1 // pred_region
      %58 = vsyncadd [#allocation7], 0
      %s60 = sshll.u32 [#allocation8], 4
      %s61 = int_to_ptr.vmem [resolvable:$true] %s60
      %s62 = sshll.u32 %s3, 4
      %s63 = int_to_ptr.hbm [resolvable:$true] %s62
      %65 = dma.vmem_to_hbm [thread:$0]  %s61, 64, %s63, [#allocation7]
    $region21: #{tpu_custom_call.1} parent=1 // pred_fallthru
      _
    // Predicated region
    $region22: #{tpu_custom_call.1} parent=1 // pred_check
      _
    $region23: #{tpu_custom_call.1} parent=1 // pred_check_branch
      %67 = sbr.rel (0) target = $region25
    $region24: #{tpu_custom_call.1} parent=1 // pred_region
      %69 = dma.done [#allocation4], 64
    $region25: #{tpu_custom_call.1} parent=1 // pred_fallthru
      _
    // Predicated region
    $region26: #{tpu_custom_call.1} parent=1 // pred_check
      _
    $region27: #{tpu_custom_call.1} parent=1 // pred_check_branch
      %71 = sbr.rel (0) target = $region29
    $region28: #{tpu_custom_call.1} parent=1 // pred_region
      %73 = dma.done [#allocation7], 64
    $region29: #{tpu_custom_call.1} parent=1 // pred_fallthru
      _
    // Predicated region
    $region30: #{tpu_custom_call.1} parent=1 // pred_check
      _
    $region31: #{tpu_custom_call.1} parent=1 // pred_check_branch
      %75 = sbr.rel (0) target = $region33
    $region32: #{tpu_custom_call.1} parent=1 // pred_region
      %77 = dma.done [#allocation7], 64
    $region33: #{tpu_custom_call.1} parent=1 // pred_fallthru
      _
    %78 = vsyncpa [#allocation3], 1
    %79 = vsyncpa [#allocation4], 1
    %80 = vsyncpa [#allocation7], 1

</llo_original>
